<compile_context>
chip_gen: v7x
topology: tpu7x:2x2x1
jax: 0.10.0
libtpu: 0.0.40
codegen_flags: <defaults>
</compile_context>

<pallas_src>
import functools

import jax
import jax.numpy as jnp
from jax.experimental import pallas as pl
from jax.experimental.pallas import tpu as pltpu


def _round_up(v, m):
    return (v + m - 1) // m * m


# ---------------------------------------------------------------------------
# Kernel
# ---------------------------------------------------------------------------
def _tta_pool_head_kernel(x_ref, w_ref, b_ref, o_ref, acc_ref, *,
                          hw, thw, lane_accum):
    """Fused global-average-pool + linear head, tiled over (batch, spatial).

    x_ref:   (TN, C, THW)            input dtype (f32 / bf16)
    w_ref:   (C, K_pad)   bf16       classifier weight, pre-scaled by 1/HW
    b_ref:   (1, K_pad)   f32        classifier bias (lane-padded)
    o_ref:   (TN, K_pad)  f32        logits (written in epilogue only)
    acc_ref: (TN, C) or (TN, C, 128) f32 running spatial partial sum (VMEM)
    """
    j = pl.program_id(1)                       # spatial (reduction) step
    last_j = pl.num_programs(1) - 1

    @pl.when(j == 0)
    def _init():
        acc_ref[...] = jnp.zeros_like(acc_ref)

    def accumulate(x):
        if lane_accum:
            # thw == 128: pure VPU add; the single 128-wide XLU reduce is
            # deferred to the epilogue (keeps the steady state DMA-bound).
            acc_ref[...] += x
        else:
            acc_ref[...] += jnp.sum(x, axis=-1)

    rem = hw % thw                             # static: >0 iff last tile ragged
    if rem == 0:
        accumulate(x_ref[...].astype(jnp.float32))
    else:
        # Steady state: full tiles, no masking cost.
        @pl.when(j != last_j)
        def _steady():
            accumulate(x_ref[...].astype(jnp.float32))

        # Ragged last tile: OOB lanes are unspecified -> zero them before the
        # accumulate (this replaces the old host-side jnp.pad of the activation).
        @pl.when(j == last_j)
        def _ragged():
            x = x_ref[...].astype(jnp.float32)
            lane = jax.lax.broadcasted_iota(jnp.int32, x.shape, dimension=x.ndim - 1)
            accumulate(jnp.where(lane < rem, x, 0.0))

    @pl.when(j == last_j)
    def _epilogue():
        # Head matmul + bias run once per batch tile (off the hot loop).
        acc = acc_ref[...]
        feat_sum = jnp.sum(acc, axis=-1) if lane_accum else acc        # (TN, C)
        feat = feat_sum.astype(w_ref.dtype)                            # bf16 MXU path
        logits = jnp.dot(feat, w_ref[...],
                         preferred_element_type=jnp.float32)           # (TN, K_pad)
        o_ref[...] = (logits + b_ref[...]).astype(o_ref.dtype)


# ---------------------------------------------------------------------------
# Wrapper-side sizing helpers
# ---------------------------------------------------------------------------
def _vmem_capacity_bytes():
    """Probe physical VMEM (generation-aware budgets); conservative fallback."""
    try:
        info = pltpu.get_tpu_info()
        cap = getattr(info, "vmem_capacity_bytes", None)
        if cap:
            return int(cap)
    except Exception:
        pass
    return 64 * 1024 * 1024          # assume v7x-sized VMEM if probing fails


def _choose_tiles(n, c, hw, x_itemsize, per_buf_budget):
    """Co-derive (tn, thw): shrink tn before thw so THW stays >= 512 if possible."""
    c_sl = _round_up(c, max(8, 32 // x_itemsize))     # sublane-padded C rows

    # Batch tile: full batch for tiny N (output-spec constraint), otherwise a
    # multiple of 8 giving >= 2 "parallel" programs (feeds both v7x cores) and
    # capped at 256 (fills the v6e/v7x 256-wide MXU M dim in the epilogue).
    if n <= 8:
        tn = n
    else:
        tn = min(256, max(8, _round_up(pl.cdiv(n, 2), 8)))

    def max_thw(tn_):
        return max(0, (per_buf_budget // (tn_ * c_sl * x_itemsize)) // 128 * 128)

    # Prefer shrinking tn (down to 8) over dropping below a 512-lane spatial tile.
    while n > 8 and tn > 8 and max_thw(tn) < 512:
        tn = max(8, _round_up(tn // 2, 8))

    cap = max(128, max_thw(tn))
    thw = hw if hw <= cap else cap            # full extent, or a multiple of 128
    return tn, thw


def _vmem_footprint_bytes(tn, thw, c, k_pad, x_itemsize, lane_accum):
    c_sl_x = _round_up(c, max(8, 32 // x_itemsize))
    x_bytes = 2 * tn * c_sl_x * _round_up(thw, 128) * x_itemsize   # double-buffered
    w_bytes = 1 * _round_up(c, 16) * k_pad * 2                     # bf16, 1 buffer
    b_bytes = 8 * k_pad * 4
    o_bytes = 2 * _round_up(tn, 8) * k_pad * 4
    if lane_accum:
        acc_bytes = tn * _round_up(c, 8) * 128 * 4
    else:
        acc_bytes = _round_up(tn, 8) * _round_up(c, 128) * 4
    return x_bytes + w_bytes + b_bytes + o_bytes + acc_bytes


# ---------------------------------------------------------------------------
# Forward pass (BaseTTAModule.__call__/forward -> self.model(x))
# ---------------------------------------------------------------------------
def base_tta_module_forward(x_nchw, w, b, *, batch_tile=None, hw_tile=None):
    """x_nchw: (N, C, H, W); w: (C, K); b: (K,) -> (N, K) float32 logits."""
    n, c, h, wdt = x_nchw.shape
    hw = h * wdt
    k = w.shape[1]
    k_pad = _round_up(k, 128)                 # lane-dense output -> unmasked vst
    x_itemsize = x_nchw.dtype.itemsize

    # Generation-aware VMEM budgets (v5e/v6e: 128 MiB physical; v7x: 64 MiB).
    if _vmem_capacity_bytes() >= 100 * 1024 * 1024:
        per_buf_budget, vmem_limit = 12 * 1024 * 1024, 80 * 1024 * 1024
    else:
        per_buf_budget, vmem_limit = 6 * 1024 * 1024, 44 * 1024 * 1024

    tn, thw = _choose_tiles(n, c, hw, x_itemsize, per_buf_budget)
    if batch_tile is not None:
        if not (batch_tile == n or batch_tile % 8 == 0):
            raise ValueError("batch_tile must equal N or be a multiple of 8")
        tn = batch_tile
    if hw_tile is not None:
        if not (hw_tile == hw or hw_tile % 128 == 0):
            raise ValueError("hw_tile must equal H*W or be a multiple of 128")
        thw = hw_tile

    lane_accum = (thw == 128)                 # defer the lane reduce to the epilogue
    acc_shape = (tn, c, 128) if lane_accum else (tn, c)

    footprint = _vmem_footprint_bytes(tn, thw, c, k_pad, x_itemsize, lane_accum)
    if footprint > vmem_limit:
        raise ValueError(
            f"VMEM footprint {footprint >> 20} MiB exceeds limit "
            f"{vmem_limit >> 20} MiB (tn={tn}, thw={thw}, C={c}, K_pad={k_pad}); "
            "reduce batch_tile/hw_tile or use a bf16 activation.")

    # Host-side prep touches only the tiny head params, never the activation:
    #   * fold 1/HW into W (so the kernel epilogue skips the scale multiply)
    #   * keep W in bf16 (MXU-native, half the HBM/VMEM footprint)
    inv_hw = 1.0 / hw
    w2 = jnp.pad((w.astype(jnp.float32) * inv_hw).astype(jnp.bfloat16),
                 ((0, 0), (0, k_pad - k)))
    b2 = jnp.pad(b.astype(jnp.float32), ((0, k_pad - k),)).reshape(1, k_pad)

    # Free trailing-dim merge; NO padding copy of the activation.
    x3 = x_nchw.reshape(n, c, hw)

    grid = (pl.cdiv(n, tn), pl.cdiv(hw, thw))   # (parallel batch, arbitrary reduce)

    def _build(single_buffer_weights):
        extra = dict(pipeline_mode=pl.Buffered(1)) if single_buffer_weights else {}
        return pl.pallas_call(
            functools.partial(_tta_pool_head_kernel,
                              hw=hw, thw=thw, lane_accum=lane_accum),
            out_shape=jax.ShapeDtypeStruct((n, k_pad), jnp.float32),
            grid_spec=pltpu.PrefetchScalarGridSpec(
                num_scalar_prefetch=0,
                grid=grid,
                in_specs=[
                    # x: one (TN, C, THW) tile per grid point (double-buffered).
                    pl.BlockSpec((tn, c, thw), lambda i, j: (i, 0, j)),
                    # W / bias: constant index map -> resident, single buffer.
                    pl.BlockSpec((c, k_pad), lambda i, j: (0, 0), **extra),
                    pl.BlockSpec((1, k_pad), lambda i, j: (0, 0), **extra),
                ],
                # Output block fixed across the reduction axis; epilogue-only write.
                out_specs=pl.BlockSpec((tn, k_pad), lambda i, j: (i, 0)),
                scratch_shapes=[pltpu.VMEM(acc_shape, jnp.float32)],
            ),
            compiler_params=pltpu.CompilerParams(
                dimension_semantics=("parallel", "arbitrary"),
                vmem_limit_bytes=vmem_limit,
            ),
        )

    try:
        out = _build(True)(x3, w2, b2)
    except Exception:
        # Fallback for JAX builds without BlockSpec.pipeline_mode support; any
        # unrelated error re-raises from here.
        out = _build(False)(x3, w2, b2)

    return out[:n, :k]


def _reference_forward(x_nchw, w, b):
    """Pure-JAX reference of the synthetic inner model."""
    feat = jnp.mean(x_nchw.astype(jnp.float32), axis=(2, 3))   # (N, C)
    return feat @ w.astype(jnp.float32) + b.astype(jnp.float32)[None, :]


if __name__ == "__main__":
    key = jax.random.PRNGKey(0)
    kx, kw, kb = jax.random.split(key, 3)

    # HW = 225 is deliberately not a multiple of 128 so the tiled run exercises
    # the in-kernel ragged-tile lane mask (the replacement for host-side pad).
    N, C, H, W = 2, 4, 15, 15
    K = 8

    x = jax.random.normal(kx, (N, C, H, W), dtype=jnp.float32)
    w = jax.random.normal(kw, (C, K), dtype=jnp.float32) * 0.1
    b = jax.random.normal(kb, (K,), dtype=jnp.float32) * 0.01

    ref = _reference_forward(x, w, b)

    # 1) Default tiling: single full-extent spatial tile (thw = HW).
    out1 = jax.block_until_ready(base_tta_module_forward(x, w, b))
    # 2) Forced 128-wide tiles: multi-step reduction, ragged last tile masked
    #    in-kernel, lane-block (VPU-only) accumulation path.
    out2 = jax.block_until_ready(base_tta_module_forward(x, w, b, hw_tile=128))

    for out in (out1, out2):
        assert out.shape == (N, K), out.shape
        assert jnp.allclose(out, ref, atol=2e-3, rtol=2e-3), (
            f"max abs err {jnp.max(jnp.abs(out - ref))}")

    print("KERNEL_OK")
</pallas_src>

<mosaic_0001>
module attributes {stable_mosaic.version = 11 : i64} {
  func.func @_tta_pool_head_kernel(%arg0: i32, %arg1: i32, %arg2: memref<2x4x225xf32, #tpu.memory_space<vmem>>, %arg3: memref<4x128xbf16, #tpu.memory_space<vmem>>, %arg4: memref<1x128xf32, #tpu.memory_space<vmem>>, %arg5: memref<2x128xf32, #tpu.memory_space<vmem>>, %arg6: memref<2x4xf32, #tpu.memory_space<vmem>>) attributes {dimension_semantics = [#tpu.dimension_semantics<parallel>, #tpu.dimension_semantics<arbitrary>], iteration_bounds = array<i64: 1, 1>, scalar_prefetch = 0 : i64, scratch_operands = 1 : i64, tpu.core_type = #tpu.core_type<tc>, window_params = [{transform_indices = @transform_0, window_bounds = array<i64: 2, 4, 225>}, {pipeline_mode = #tpu.pipeline_mode<synchronous>, transform_indices = @transform_1, window_bounds = array<i64: 4, 128>}, {pipeline_mode = #tpu.pipeline_mode<synchronous>, transform_indices = @transform_2, window_bounds = array<i64: 1, 128>}, {transform_indices = @transform_3, window_bounds = array<i64: 2, 128>}]} {
    %c0_i32 = arith.constant 0 : i32
    %0 = arith.cmpi eq, %arg1, %c0_i32 : i32
    %1 = arith.extui %0 : i1 to i32
    %c0_i32_0 = arith.constant 0 : i32
    %2 = arith.cmpi ne, %1, %c0_i32_0 : i32
    scf.if %2 {
      %cst_9 = arith.constant 0.000000e+00 : f32
      %11 = vector.broadcast %cst_9 : f32 to vector<2x4xf32>
      %c0_10 = arith.constant 0 : index
      %c0_11 = arith.constant 0 : index
      %12 = vector.load %arg6[%c0_10, %c0_11] : memref<2x4xf32, #tpu.memory_space<vmem>>, vector<2x4xf32>
      tpu.vector_store %arg6[%c0_10, %c0_11], %11 {strides = array<i32>} : memref<2x4xf32, #tpu.memory_space<vmem>>, vector<2x4xf32>,
    } else {
    }
    %c0 = arith.constant 0 : index
    %c0_1 = arith.constant 0 : index
    %c0_2 = arith.constant 0 : index
    %3 = vector.load %arg2[%c0, %c0_1, %c0_2] : memref<2x4x225xf32, #tpu.memory_space<vmem>>, vector<2x4x225xf32>
    %c0_3 = arith.constant 0 : index
    %c0_4 = arith.constant 0 : index
    %4 = vector.load %arg6[%c0_3, %c0_4] : memref<2x4xf32, #tpu.memory_space<vmem>>, vector<2x4xf32>
    %cst = arith.constant dense<0.000000e+00> : vector<2x4xf32>
    %5 = vector.multi_reduction <add>, %3, %cst [2] : vector<2x4x225xf32> to vector<2x4xf32>
    %6 = arith.addf %4, %5 : vector<2x4xf32>
    %c0_5 = arith.constant 0 : index
    %c0_6 = arith.constant 0 : index
    %7 = vector.load %arg6[%c0_5, %c0_6] : memref<2x4xf32, #tpu.memory_space<vmem>>, vector<2x4xf32>
    tpu.vector_store %arg6[%c0_5, %c0_6], %6 {strides = array<i32>} : memref<2x4xf32, #tpu.memory_space<vmem>>, vector<2x4xf32>,
    %c0_i32_7 = arith.constant 0 : i32
    %8 = arith.cmpi eq, %arg1, %c0_i32_7 : i32
    %9 = arith.extui %8 : i1 to i32
    %c0_i32_8 = arith.constant 0 : i32
    %10 = arith.cmpi ne, %9, %c0_i32_8 : i32
    scf.if %10 {
      %c0_9 = arith.constant 0 : index
      %c0_10 = arith.constant 0 : index
      %11 = vector.load %arg6[%c0_9, %c0_10] : memref<2x4xf32, #tpu.memory_space<vmem>>, vector<2x4xf32>
      %12 = arith.truncf %11 : vector<2x4xf32> to vector<2x4xbf16>
      %c0_11 = arith.constant 0 : index
      %c0_12 = arith.constant 0 : index
      %13 = vector.load %arg3[%c0_11, %c0_12] : memref<4x128xbf16, #tpu.memory_space<vmem>>, vector<4x128xbf16>
      %cst_13 = arith.constant dense<0.000000e+00> : vector<2x128xf32>
      %14 = tpu.matmul %12, %13, %cst_13 {dimension_numbers = #tpu.dot_dimension_numbers<[1], [0], [0], [1], [0, 0, 1, 1], [], []>} : vector<2x4xbf16>, vector<4x128xbf16>, vector<2x128xf32> -> vector<2x128xf32>
      %c0_14 = arith.constant 0 : index
      %c0_15 = arith.constant 0 : index
      %15 = vector.load %arg4[%c0_14, %c0_15] : memref<1x128xf32, #tpu.memory_space<vmem>>, vector<1x128xf32>
      %16 = vector.broadcast %15 : vector<1x128xf32> to vector<2x128xf32>
      %17 = arith.addf %14, %16 : vector<2x128xf32>
      %c0_16 = arith.constant 0 : index
      %c0_17 = arith.constant 0 : index
      %18 = vector.load %arg5[%c0_16, %c0_17] : memref<2x128xf32, #tpu.memory_space<vmem>>, vector<2x128xf32>
      tpu.vector_store %arg5[%c0_16, %c0_17], %17 {strides = array<i32>} : memref<2x128xf32, #tpu.memory_space<vmem>>, vector<2x128xf32>,
    } else {
    }
    return
  }
  func.func @transform_0(%arg0: i32, %arg1: i32) -> (i32, i32, i32) {
    %c0_i32 = arith.constant 0 : i32
    %c0_i32_0 = arith.constant 0 : i32
    return %arg0, %c0_i32, %arg1 : i32, i32, i32
  }
  func.func @transform_1(%arg0: i32, %arg1: i32) -> (i32, i32) {
    %c0_i32 = arith.constant 0 : i32
    %c0_i32_0 = arith.constant 0 : i32
    %c0_i32_1 = arith.constant 0 : i32
    return %c0_i32, %c0_i32_0 : i32, i32
  }
  func.func @transform_2(%arg0: i32, %arg1: i32) -> (i32, i32) {
    %c0_i32 = arith.constant 0 : i32
    %c0_i32_0 = arith.constant 0 : i32
    %c0_i32_1 = arith.constant 0 : i32
    return %c0_i32, %c0_i32_0 : i32, i32
  }
  func.func @transform_3(%arg0: i32, %arg1: i32) -> (i32, i32) {
    %c0_i32 = arith.constant 0 : i32
    %c0_i32_0 = arith.constant 0 : i32
    return %arg0, %c0_i32 : i32, i32
  }
}

module attributes {stable_mosaic.version = 11 : i64} {
  func.func @_tta_pool_head_kernel(%arg0: i32, %arg1: i32, %arg2: memref<2x4x225xf32, #tpu.memory_space<vmem>>, %arg3: memref<4x128xbf16, #tpu.memory_space<vmem>>, %arg4: memref<1x128xf32, #tpu.memory_space<vmem>>, %arg5: memref<2x128xf32, #tpu.memory_space<vmem>>, %arg6: memref<2x4xf32, #tpu.memory_space<vmem>>) attributes {dimension_semantics = [#tpu.dimension_semantics<parallel>, #tpu.dimension_semantics<arbitrary>], iteration_bounds = array<i64: 1, 1>, scalar_prefetch = 0 : i64, scratch_operands = 1 : i64, tpu.core_type = #tpu.core_type<tc>, window_params = [{transform_indices = @transform_0, window_bounds = array<i64: 2, 4, 225>}, {pipeline_mode = #tpu.pipeline_mode<synchronous>, transform_indices = @transform_1, window_bounds = array<i64: 4, 128>}, {pipeline_mode = #tpu.pipeline_mode<synchronous>, transform_indices = @transform_2, window_bounds = array<i64: 1, 128>}, {transform_indices = @transform_3, window_bounds = array<i64: 2, 128>}]} {
    %c0_i32 = arith.constant 0 : i32
    %0 = arith.cmpi eq, %arg1, %c0_i32 : i32
    %1 = arith.extui %0 : i1 to i32
    %c0_i32_0 = arith.constant 0 : i32
    %2 = arith.cmpi ne, %1, %c0_i32_0 : i32
    scf.if %2 {
      %cst_9 = arith.constant 0.000000e+00 : f32
      %11 = vector.broadcast %cst_9 : f32 to vector<2x4xf32>
      %c0_10 = arith.constant 0 : index
      %c0_11 = arith.constant 0 : index
      %12 = vector.load %arg6[%c0_10, %c0_11] : memref<2x4xf32, #tpu.memory_space<vmem>>, vector<2x4xf32>
      tpu.vector_store %arg6[%c0_10, %c0_11], %11 {strides = array<i32>} : memref<2x4xf32, #tpu.memory_space<vmem>>, vector<2x4xf32>,
    } else {
    }
    %c0 = arith.constant 0 : index
    %c0_1 = arith.constant 0 : index
    %c0_2 = arith.constant 0 : index
    %3 = vector.load %arg2[%c0, %c0_1, %c0_2] : memref<2x4x225xf32, #tpu.memory_space<vmem>>, vector<2x4x225xf32>
    %c0_3 = arith.constant 0 : index
    %c0_4 = arith.constant 0 : index
    %4 = vector.load %arg6[%c0_3, %c0_4] : memref<2x4xf32, #tpu.memory_space<vmem>>, vector<2x4xf32>
    %cst = arith.constant dense<0.000000e+00> : vector<2x4xf32>
    %5 = vector.multi_reduction <add>, %3, %cst [2] : vector<2x4x225xf32> to vector<2x4xf32>
    %6 = arith.addf %4, %5 : vector<2x4xf32>
    %c0_5 = arith.constant 0 : index
    %c0_6 = arith.constant 0 : index
    %7 = vector.load %arg6[%c0_5, %c0_6] : memref<2x4xf32, #tpu.memory_space<vmem>>, vector<2x4xf32>
    tpu.vector_store %arg6[%c0_5, %c0_6], %6 {strides = array<i32>} : memref<2x4xf32, #tpu.memory_space<vmem>>, vector<2x4xf32>,
    %c0_i32_7 = arith.constant 0 : i32
    %8 = arith.cmpi eq, %arg1, %c0_i32_7 : i32
    %9 = arith.extui %8 : i1 to i32
    %c0_i32_8 = arith.constant 0 : i32
    %10 = arith.cmpi ne, %9, %c0_i32_8 : i32
    scf.if %10 {
      %c0_9 = arith.constant 0 : index
      %c0_10 = arith.constant 0 : index
      %11 = vector.load %arg6[%c0_9, %c0_10] : memref<2x4xf32, #tpu.memory_space<vmem>>, vector<2x4xf32>
      %12 = arith.truncf %11 : vector<2x4xf32> to vector<2x4xbf16>
      %c0_11 = arith.constant 0 : index
      %c0_12 = arith.constant 0 : index
      %13 = vector.load %arg3[%c0_11, %c0_12] : memref<4x128xbf16, #tpu.memory_space<vmem>>, vector<4x128xbf16>
      %cst_13 = arith.constant dense<0.000000e+00> : vector<2x128xf32>
      %14 = tpu.matmul %12, %13, %cst_13 {dimension_numbers = #tpu.dot_dimension_numbers<[1], [0], [0], [1], [0, 0, 1, 1], [], []>} : vector<2x4xbf16>, vector<4x128xbf16>, vector<2x128xf32> -> vector<2x128xf32>
      %c0_14 = arith.constant 0 : index
      %c0_15 = arith.constant 0 : index
      %15 = vector.load %arg4[%c0_14, %c0_15] : memref<1x128xf32, #tpu.memory_space<vmem>>, vector<1x128xf32>
      %16 = vector.broadcast %15 : vector<1x128xf32> to vector<2x128xf32>
      %17 = arith.addf %14, %16 : vector<2x128xf32>
      %c0_16 = arith.constant 0 : index
      %c0_17 = arith.constant 0 : index
      %18 = vector.load %arg5[%c0_16, %c0_17] : memref<2x128xf32, #tpu.memory_space<vmem>>, vector<2x128xf32>
      tpu.vector_store %arg5[%c0_16, %c0_17], %17 {strides = array<i32>} : memref<2x128xf32, #tpu.memory_space<vmem>>, vector<2x128xf32>,
    } else {
    }
    return
  }
  func.func @transform_0(%arg0: i32, %arg1: i32) -> (i32, i32, i32) {
    %c0_i32 = arith.constant 0 : i32
    %c0_i32_0 = arith.constant 0 : i32
    return %arg0, %c0_i32, %arg1 : i32, i32, i32
  }
  func.func @transform_1(%arg0: i32, %arg1: i32) -> (i32, i32) {
    %c0_i32 = arith.constant 0 : i32
    %c0_i32_0 = arith.constant 0 : i32
    %c0_i32_1 = arith.constant 0 : i32
    return %c0_i32, %c0_i32_0 : i32, i32
  }
  func.func @transform_2(%arg0: i32, %arg1: i32) -> (i32, i32) {
    %c0_i32 = arith.constant 0 : i32
    %c0_i32_0 = arith.constant 0 : i32
    %c0_i32_1 = arith.constant 0 : i32
    return %c0_i32, %c0_i32_0 : i32, i32
  }
  func.func @transform_3(%arg0: i32, %arg1: i32) -> (i32, i32) {
    %c0_i32 = arith.constant 0 : i32
    %c0_i32_0 = arith.constant 0 : i32
    return %arg0, %c0_i32 : i32, i32
  }
}

</mosaic_0001>

<llo_original>
// kernel: tpu_custom_call.1
$region0: #{tpu_custom_call.1}
  #allocation0 [shape = 'u32[]', space=smem, size = 0x4, offset = 0x4, fixed_abs, tag = 'smem constant byte address 0x4 - core index']
  #allocation1 [shape = 'u32[144,128]{1,0:T(1,128)}', space=vmem, size = 0x12000, scoped, tag = 'internal scratch']
  #allocation2 [shape = 'f32[2,4]{1,0:T(2,128)}', space=vmem, size = 0x400, scoped, tag = 'scratch operand']
  %s0 = inlined_call_operand.hbm [shape: f32[2,4,225], index: 0, kind: input, shape index: {}]
  %s1 = inlined_call_operand.vmem [shape: bf16[4,128], index: 1, kind: input, shape index: {}]
  %s2 = inlined_call_operand.vmem [shape: f32[1,128], index: 2, kind: input, shape index: {}]
  %s3 = inlined_call_operand.hbm [shape: f32[2,128], index: 3, kind: output, shape index: {}]
  %s4 = sld [smem:[#allocation0]]
  $region34: #{tpu_custom_call.1} parent=0
    _
  %s6 = ssub.s32 1, %s4
  %s7 = scalar_select 0, %s6, %s4
  $region1: #{tpu_custom_call.1} parent=0
    #allocation3 [shape = 'u8[8192]{0}', space=vmem, size = 0x2000, scoped, tag = 'input window, operand 0, single buffered']
    #allocation4 [shape = 's32[1]{0}', space=sflag, size = 0x4, scoped, tag = 'scoped memory for tpu_custom_call.1']
    #allocation5 [shape = 's32[1]{0}', space=sflag, size = 0x4, scoped, tag = 'scoped memory for tpu_custom_call.1']
    #allocation6 [shape = 'u8[1024]{0}', space=vmem, size = 0x400, scoped, tag = 'output window, operand 0, single buffered']
    %8 = vsyncpa [#allocation4], 0
    %9 = vsyncpa [#allocation5], 0
    // Predicated region
    $region2: #{tpu_custom_call.1} parent=1 // pred_check
      _
    $region3: #{tpu_custom_call.1} parent=1 // pred_check_branch
      %11 = sbr.rel (0) target = $region5
    $region4: #{tpu_custom_call.1} parent=1 // pred_region
      %s13 = ssub.s32 256, 256
      %14 = vsyncadd [#allocation4], %s13
      %s15 = sshll.u32 [#allocation3], 4
      %s16 = int_to_ptr.vmem [resolvable:$true] %s15
      %21 = dma.hbm_to_vmem [thread:$0]  %s0, 256, %s16, [#allocation4], 128, 128, 8
    $region5: #{tpu_custom_call.1} parent=1 // pred_fallthru
      _
    // Predicated region
    $region6: #{tpu_custom_call.1} parent=1 // pred_check
      _
    $region7: #{tpu_custom_call.1} parent=1 // pred_check_branch
      %23 = sbr.rel (0) target = $region9
    $region8: #{tpu_custom_call.1} parent=1 // pred_region
      _
    $region9: #{tpu_custom_call.1} parent=1 // pred_fallthru
      _
    // Predicated region
    $region10: #{tpu_custom_call.1} parent=1 // pred_check
      _
    $region11: #{tpu_custom_call.1} parent=1 // pred_check_branch
      %25 = sbr.rel (0) target = $region13
    $region12: #{tpu_custom_call.1} parent=1 // pred_region
      _
    $region13: #{tpu_custom_call.1} parent=1 // pred_fallthru
      _
    // Predicated region
    $region14: #{tpu_custom_call.1} parent=1 // pred_check
      _
    $region15: #{tpu_custom_call.1} parent=1 // pred_check_branch
      %27 = sbr.rel (0) target = $region17
    $region16: #{tpu_custom_call.1} parent=1 // pred_region
      %28 = dma.done [#allocation4], 256
    $region17: #{tpu_custom_call.1} parent=1 // pred_fallthru
      _
    %p30 = scmp.eq.s32.totalorder 0, 0
    // Predicated region
    $region18: #{tpu_custom_call.1} parent=1 // pred_check
      %p31 = pneg %p30
    $region19: #{tpu_custom_call.1} parent=1 // pred_check_branch
      %33 = sbr.rel (%p31) target = $region21
    $region20: #{tpu_custom_call.1} parent=1 // pred_region
      %vm34 = vcmask 25600
      %35 = vst.msk [vmem:[#allocation2] sm:$0x3] %vm34, 0.0
    $region21: #{tpu_custom_call.1} parent=1 // pred_fallthru
      _
    %v36 = vld [vmem:[#allocation3] sm:$0xff]
    %v37 = vld [vmem:[#allocation3 + $0x8] sm:$0xff]
    %v38 = vld [vmem:[#allocation2] sm:$0x3]
    %v41 = vcombine.high %v36, %v36
    %v42 = vcombine.high %v37, %v37
    %vm45 = vcmask 1043456
    %v46 = vsel %vm45, %v36, 0.0
    %vm47 = vcmask 789504
    %v48 = vsel %vm47, %v41, 0.0
    %v49 = vadd.f32 %v46, %v48
    %50 = vadd.xlane.f32.xlu0 %v49
    %v51 = vpop.xlane.xlu0 %50
    %v52 = vsel %vm45, %v37, 0.0
    %v53 = vsel %vm47, %v42, 0.0
    %v54 = vadd.f32 %v52, %v53
    %55 = vadd.xlane.f32.xlu0 %v54
    %v56 = vpop.xlane.xlu0 %55
    %v59 = vlaneseq
    %v60 = vand.u32 %v59, 127
    %v61 = vlaneseq
    %v62 = vshrl.u32 %v61, 7
    %v63 = vsub.s32 %v60, %v62
    %v64 = vrot.slane %v51, %v63
    %v65 = vlaneseq
    %v66 = vshrl.u32 %v65, 7
    %v67 = vsub.s32 %v60, %v66
    %v68 = vrot.slane %v56, %v67
    %vm69 = vcmask 1041409
    %v70 = vsel %vm69, %v68, %v64
    %v72 = vadd.f32 %v38, %v70
    %vm73 = vcmask 25600
    %74 = vst.msk [vmem:[#allocation2] sm:$0x3] %vm73, %v72
    // Predicated region
    $region22: #{tpu_custom_call.1} parent=1 // pred_check
      %p75 = pneg %p30
    $region23: #{tpu_custom_call.1} parent=1 // pred_check_branch
      %77 = sbr.rel (%p75) target = $region25
    $region24: #{tpu_custom_call.1} parent=1 // pred_region
      %v78 = vld [vmem:[#allocation2] sm:$0x3]
      %v79 = vpack.c.bf16 %v78, %v78
      %v80 = vld [vmem:[%s1] sm:$0x3]
      %v81 = vld [vmem:[%s2] sm:$0x1]
      %v83 = vlaneseq
      %v84 = vshrl.u32 %v83, 7
      %v85 = vsub.s32 0, %v84
      %v86 = vrot.slane %v81, %v85
      %vm88 = vcmask 31744
      %v90 = vsel %vm88, %v79, 0
      %vm92 = vcmask 1041408
      %v94 = vsel %vm92, %v80, 0
      %96 = vmatprep.subr.bf16.mxu0 0
      %97 = vmatpush1.bf16.msra.mxu0 %v94
      %98 = vmatprep.subr.bf16.mxu0 0
      %99 = vmatpush1.bf16.msra.mxu0 0
      %100 = vmatprep.subr.bf16.mxu0 0
      %101 = vmatpush1.bf16.msra.mxu0 0
      %102 = vmatprep.subr.bf16.mxu0 0
      %103 = vmatpush1.bf16.msra.mxu0 0
      %104 = vmatprep.subr.bf16.mxu0 0
      %105 = vmatpush1.bf16.msra.mxu0 0
      %106 = vmatprep.subr.bf16.mxu0 0
      %107 = vmatpush1.bf16.msra.mxu0 0
      %108 = vmatprep.subr.bf16.mxu0 0
      %109 = vmatpush1.bf16.msra.mxu0 0
      %110 = vmatprep.subr.bf16.mxu0 0
      %111 = vmatpush1.bf16.msra.mxu0 0
      %112 = vmatprep.subr.bf16.mxu0 0
      %113 = vmatpush1.bf16.msra.mxu0 0
      %114 = vmatprep.subr.bf16.mxu0 0
      %115 = vmatpush1.bf16.msra.mxu0 0
      %116 = vmatprep.subr.bf16.mxu0 0
      %117 = vmatpush1.bf16.msra.mxu0 0
      %118 = vmatprep.subr.bf16.mxu0 0
      %119 = vmatpush1.bf16.msra.mxu0 0
      %120 = vmatprep.subr.bf16.mxu0 0
      %121 = vmatpush1.bf16.msra.mxu0 0
      %122 = vmatprep.subr.bf16.mxu0 0
      %123 = vmatpush1.bf16.msra.mxu0 0
      %124 = vmatprep.subr.bf16.mxu0 0
      %125 = vmatpush1.bf16.msra.mxu0 0
      %126 = vmatprep.subr.bf16.mxu0 0
      %127 = vmatpush1.bf16.msra.mxu0 0
      %128 = vmatprep.mubr.bf16.mxu0 0
      %129 = vmatmul.mubr.bf16.gmra.mrb[0].mxu0 %v90
      %v130 = vpop.f32.mrb[0].mxu0
      %v131 = vadd.f32 %v86, %v130
      %v132 = vpop.f32.mrb[0].mxu0
      %v133 = vpop.f32.mrb[0].mxu0
      %v134 = vpop.f32.mrb[0].mxu0
      %135 = vdwg.mxu0
      %136 = vst [vmem:[#allocation6] sm:$0x3] %v131
    $region25: #{tpu_custom_call.1} parent=1 // pred_fallthru
      _
    // Predicated region
    $region26: #{tpu_custom_call.1} parent=1 // pred_check
      _
    $region27: #{tpu_custom_call.1} parent=1 // pred_check_branch
      %138 = sbr.rel (0) target = $region29
    $region28: #{tpu_custom_call.1} parent=1 // pred_region
      %s140 = ssub.s32 32, 32
      %141 = vsyncadd [#allocation5], %s140
      %s143 = sshll.u32 [#allocation6], 4
      %s144 = int_to_ptr.vmem [resolvable:$true] %s143
      %146 = dma.vmem_to_hbm [thread:$0]  %s144, 32, %s3, [#allocation5]
    $region29: #{tpu_custom_call.1} parent=1 // pred_fallthru
      _
    // Predicated region
    $region30: #{tpu_custom_call.1} parent=1 // pred_check
      _
    $region31: #{tpu_custom_call.1} parent=1 // pred_check_branch
      %148 = sbr.rel (0) target = $region33
    $region32: #{tpu_custom_call.1} parent=1 // pred_region
      %149 = dma.done [#allocation5], 32
    $region33: #{tpu_custom_call.1} parent=1 // pred_fallthru
      _
    %150 = vsyncpa [#allocation4], 1
    %151 = vsyncpa [#allocation5], 1

// kernel: tpu_custom_call.1
$region0: #{tpu_custom_call.1}
  #allocation0 [shape = 'u32[]', space=smem, size = 0x4, offset = 0x4, fixed_abs, tag = 'smem constant byte address 0x4 - core index']
  #allocation1 [shape = 'u32[144,128]{1,0:T(1,128)}', space=vmem, size = 0x12000, scoped, tag = 'internal scratch']
  #allocation2 [shape = 'f32[2,4]{1,0:T(2,128)}', space=vmem, size = 0x400, scoped, tag = 'scratch operand']
  %s0 = inlined_call_operand.hbm [shape: f32[2,4,225], index: 0, kind: input, shape index: {}]
  %s1 = inlined_call_operand.vmem [shape: bf16[4,128], index: 1, kind: input, shape index: {}]
  %s2 = inlined_call_operand.vmem [shape: f32[1,128], index: 2, kind: input, shape index: {}]
  %s3 = inlined_call_operand.hbm [shape: f32[2,128], index: 3, kind: output, shape index: {}]
  %s4 = sld [smem:[#allocation0]]
  $region34: #{tpu_custom_call.1} parent=0
    _
  %s6 = ssub.s32 1, %s4
  %s7 = scalar_select 0, %s6, %s4
  $region1: #{tpu_custom_call.1} parent=0
    #allocation3 [shape = 'u8[8192]{0}', space=vmem, size = 0x2000, scoped, tag = 'input window, operand 0, single buffered']
    #allocation4 [shape = 's32[1]{0}', space=sflag, size = 0x4, scoped, tag = 'scoped memory for tpu_custom_call.1']
    #allocation5 [shape = 's32[1]{0}', space=sflag, size = 0x4, scoped, tag = 'scoped memory for tpu_custom_call.1']
    #allocation6 [shape = 'u8[1024]{0}', space=vmem, size = 0x400, scoped, tag = 'output window, operand 0, single buffered']
    %8 = vsyncpa [#allocation4], 0
    %9 = vsyncpa [#allocation5], 0
    // Predicated region
    $region2: #{tpu_custom_call.1} parent=1 // pred_check
      _
    $region3: #{tpu_custom_call.1} parent=1 // pred_check_branch
      %11 = sbr.rel (0) target = $region5
    $region4: #{tpu_custom_call.1} parent=1 // pred_region
      %s13 = ssub.s32 256, 256
      %14 = vsyncadd [#allocation4], %s13
      %s15 = sshll.u32 [#allocation3], 4
      %s16 = int_to_ptr.vmem [resolvable:$true] %s15
      %21 = dma.hbm_to_vmem [thread:$0]  %s0, 256, %s16, [#allocation4], 128, 128, 8
    $region5: #{tpu_custom_call.1} parent=1 // pred_fallthru
      _
    // Predicated region
    $region6: #{tpu_custom_call.1} parent=1 // pred_check
      _
    $region7: #{tpu_custom_call.1} parent=1 // pred_check_branch
      %23 = sbr.rel (0) target = $region9
    $region8: #{tpu_custom_call.1} parent=1 // pred_region
      _
    $region9: #{tpu_custom_call.1} parent=1 // pred_fallthru
      _
    // Predicated region
    $region10: #{tpu_custom_call.1} parent=1 // pred_check
      _
    $region11: #{tpu_custom_call.1} parent=1 // pred_check_branch
      %25 = sbr.rel (0) target = $region13
    $region12: #{tpu_custom_call.1} parent=1 // pred_region
      _
    $region13: #{tpu_custom_call.1} parent=1 // pred_fallthru
      _
    // Predicated region
    $region14: #{tpu_custom_call.1} parent=1 // pred_check
      _
    $region15: #{tpu_custom_call.1} parent=1 // pred_check_branch
      %27 = sbr.rel (0) target = $region17
    $region16: #{tpu_custom_call.1} parent=1 // pred_region
      %28 = dma.done [#allocation4], 256
    $region17: #{tpu_custom_call.1} parent=1 // pred_fallthru
      _
    %p30 = scmp.eq.s32.totalorder 0, 0
    // Predicated region
    $region18: #{tpu_custom_call.1} parent=1 // pred_check
      %p31 = pneg %p30
    $region19: #{tpu_custom_call.1} parent=1 // pred_check_branch
      %33 = sbr.rel (%p31) target = $region21
    $region20: #{tpu_custom_call.1} parent=1 // pred_region
      %vm34 = vcmask 25600
      %35 = vst.msk [vmem:[#allocation2] sm:$0x3] %vm34, 0.0
    $region21: #{tpu_custom_call.1} parent=1 // pred_fallthru
      _
    %v36 = vld [vmem:[#allocation3] sm:$0xff]
    %v37 = vld [vmem:[#allocation3 + $0x8] sm:$0xff]
    %v38 = vld [vmem:[#allocation2] sm:$0x3]
    %v41 = vcombine.high %v36, %v36
    %v42 = vcombine.high %v37, %v37
    %vm45 = vcmask 1043456
    %v46 = vsel %vm45, %v36, 0.0
    %vm47 = vcmask 789504
    %v48 = vsel %vm47, %v41, 0.0
    %v49 = vadd.f32 %v46, %v48
    %50 = vadd.xlane.f32.xlu0 %v49
    %v51 = vpop.xlane.xlu0 %50
    %v52 = vsel %vm45, %v37, 0.0
    %v53 = vsel %vm47, %v42, 0.0
    %v54 = vadd.f32 %v52, %v53
    %55 = vadd.xlane.f32.xlu0 %v54
    %v56 = vpop.xlane.xlu0 %55
    %v59 = vlaneseq
    %v60 = vand.u32 %v59, 127
    %v61 = vlaneseq
    %v62 = vshrl.u32 %v61, 7
    %v63 = vsub.s32 %v60, %v62
    %v64 = vrot.slane %v51, %v63
    %v65 = vlaneseq
    %v66 = vshrl.u32 %v65, 7
    %v67 = vsub.s32 %v60, %v66
    %v68 = vrot.slane %v56, %v67
    %vm69 = vcmask 1041409
    %v70 = vsel %vm69, %v68, %v64
    %v72 = vadd.f32 %v38, %v70
    %vm73 = vcmask 25600
    %74 = vst.msk [vmem:[#allocation2] sm:$0x3] %vm73, %v72
    // Predicated region
    $region22: #{tpu_custom_call.1} parent=1 // pred_check
      %p75 = pneg %p30
    $region23: #{tpu_custom_call.1} parent=1 // pred_check_branch
      %77 = sbr.rel (%p75) target = $region25
    $region24: #{tpu_custom_call.1} parent=1 // pred_region
      %v78 = vld [vmem:[#allocation2] sm:$0x3]
      %v79 = vpack.c.bf16 %v78, %v78
      %v80 = vld [vmem:[%s1] sm:$0x3]
      %v81 = vld [vmem:[%s2] sm:$0x1]
      %v83 = vlaneseq
      %v84 = vshrl.u32 %v83, 7
      %v85 = vsub.s32 0, %v84
      %v86 = vrot.slane %v81, %v85
      %vm88 = vcmask 31744
      %v90 = vsel %vm88, %v79, 0
      %vm92 = vcmask 1041408
      %v94 = vsel %vm92, %v80, 0
      %96 = vmatprep.subr.bf16.mxu0 0
      %97 = vmatpush1.bf16.msra.mxu0 %v94
      %98 = vmatprep.subr.bf16.mxu0 0
      %99 = vmatpush1.bf16.msra.mxu0 0
      %100 = vmatprep.subr.bf16.mxu0 0
      %101 = vmatpush1.bf16.msra.mxu0 0
      %102 = vmatprep.subr.bf16.mxu0 0
      %103 = vmatpush1.bf16.msra.mxu0 0
      %104 = vmatprep.subr.bf16.mxu0 0
      %105 = vmatpush1.bf16.msra.mxu0 0
      %106 = vmatprep.subr.bf16.mxu0 0
      %107 = vmatpush1.bf16.msra.mxu0 0
      %108 = vmatprep.subr.bf16.mxu0 0
      %109 = vmatpush1.bf16.msra.mxu0 0
      %110 = vmatprep.subr.bf16.mxu0 0
      %111 = vmatpush1.bf16.msra.mxu0 0
      %112 = vmatprep.subr.bf16.mxu0 0
      %113 = vmatpush1.bf16.msra.mxu0 0
      %114 = vmatprep.subr.bf16.mxu0 0
      %115 = vmatpush1.bf16.msra.mxu0 0
      %116 = vmatprep.subr.bf16.mxu0 0
      %117 = vmatpush1.bf16.msra.mxu0 0
      %118 = vmatprep.subr.bf16.mxu0 0
      %119 = vmatpush1.bf16.msra.mxu0 0
      %120 = vmatprep.subr.bf16.mxu0 0
      %121 = vmatpush1.bf16.msra.mxu0 0
      %122 = vmatprep.subr.bf16.mxu0 0
      %123 = vmatpush1.bf16.msra.mxu0 0
      %124 = vmatprep.subr.bf16.mxu0 0
      %125 = vmatpush1.bf16.msra.mxu0 0
      %126 = vmatprep.subr.bf16.mxu0 0
      %127 = vmatpush1.bf16.msra.mxu0 0
      %128 = vmatprep.mubr.bf16.mxu0 0
      %129 = vmatmul.mubr.bf16.gmra.mrb[0].mxu0 %v90
      %v130 = vpop.f32.mrb[0].mxu0
      %v131 = vadd.f32 %v86, %v130
      %v132 = vpop.f32.mrb[0].mxu0
      %v133 = vpop.f32.mrb[0].mxu0
      %v134 = vpop.f32.mrb[0].mxu0
      %135 = vdwg.mxu0
      %136 = vst [vmem:[#allocation6] sm:$0x3] %v131
    $region25: #{tpu_custom_call.1} parent=1 // pred_fallthru
      _
    // Predicated region
    $region26: #{tpu_custom_call.1} parent=1 // pred_check
      _
    $region27: #{tpu_custom_call.1} parent=1 // pred_check_branch
      %138 = sbr.rel (0) target = $region29
    $region28: #{tpu_custom_call.1} parent=1 // pred_region
      %s140 = ssub.s32 32, 32
      %141 = vsyncadd [#allocation5], %s140
      %s143 = sshll.u32 [#allocation6], 4
      %s144 = int_to_ptr.vmem [resolvable:$true] %s143
      %146 = dma.vmem_to_hbm [thread:$0]  %s144, 32, %s3, [#allocation5]
    $region29: #{tpu_custom_call.1} parent=1 // pred_fallthru
      _
    // Predicated region
    $region30: #{tpu_custom_call.1} parent=1 // pred_check
      _
    $region31: #{tpu_custom_call.1} parent=1 // pred_check_branch
      %148 = sbr.rel (0) target = $region33
    $region32: #{tpu_custom_call.1} parent=1 // pred_region
      %149 = dma.done [#allocation5], 32
    $region33: #{tpu_custom_call.1} parent=1 // pred_fallthru
      _
    %150 = vsyncpa [#allocation4], 1
    %151 = vsyncpa [#allocation5], 1

</llo_original>
